<compile_context>
chip_gen: v7x
topology: tpu7x:2x2x1
jax: 0.10.0
libtpu: 0.0.40
codegen_flags: <defaults>
</compile_context>

<pallas_src>
import functools

import jax
import jax.numpy as jnp
from jax.experimental import pallas as pl
from jax.experimental.pallas import tpu as pltpu


def _round_up(n, m):
    return ((n + m - 1) // m) * m


def _fused_gemm_bias_kernel(x_ref, w_ref, b_ref, o_ref):
    # (TB, K) @ (K, 128) on the MXU with f32 accumulation, then bias broadcast.
    acc = jnp.dot(x_ref[...], w_ref[...], preferred_element_type=jnp.float32)
    o_ref[...] = (acc + b_ref[...]).astype(o_ref.dtype)


def _fuse_params(params):
    """Collapse the three bias-affine layers into one (W, b). Exact math."""
    w1t, b1, w2t, b2, w3t, b3 = params
    w = w1t @ w2t @ w3t                 # (in_features, out_features)
    b = (b1 @ w2t + b2) @ w3t + b3      # (1, out_features)
    return w, b


def _pack_factor(in_f, out_f):
    """Rows packed per kernel row so the output last dim becomes 128 lanes."""
    if 0 < out_f <= 128 and 128 % out_f == 0 and (128 // out_f) * in_f <= 8192:
        return 128 // out_f
    return 1  # generic fallback: un-packed layout (still correct)


@functools.partial(jax.jit, static_argnames=("max_tile",))
def multidef_forward(x, params, max_tile=1024):
    """MultiDef.forward: layer3(layer2(layer1(x))) as one fused GEMM + bias."""
    B, in_f = x.shape
    w, b = _fuse_params(params)
    out_f = w.shape[1]
    p = _pack_factor(in_f, out_f)

    # Lane-dense repack (free row-major bitcast when B % p == 0).
    bp_rows = _round_up(B, p)
    if bp_rows != B:
        # Only when B is not a multiple of p (costs one extra pass over x).
        x = jnp.pad(x, ((0, bp_rows - B), (0, 0)))
    b_pack = bp_rows // p
    xp = x.reshape(b_pack, p * in_f)                    # (B/p, p*in_f)
    wp = jnp.kron(jnp.eye(p, dtype=w.dtype), w)         # (p*in_f, p*out_f) block-diag
    bp = jnp.tile(b, (1, p))                            # (1, p*out_f)

    # Tile: large (amortize per-step overhead), multiple of 8 sublanes, and
    # capped near half the rows so v7x gets >= 2 grid steps for its 2 TCs.
    tb = min(max_tile, _round_up(max(1, (b_pack + 1) // 2), 8))
    grid = (pl.cdiv(b_pack, tb),)   # ragged last block handled by Pallas

    out_p = pl.pallas_call(
        _fused_gemm_bias_kernel,
        out_shape=jax.ShapeDtypeStruct((b_pack, p * out_f), x.dtype),
        grid=grid,
        in_specs=[
            pl.BlockSpec((tb, p * in_f), lambda i: (i, 0)),        # x: row-tiled
            pl.BlockSpec((p * in_f, p * out_f), lambda i: (0, 0)), # W: resident
            pl.BlockSpec((1, p * out_f), lambda i: (0, 0)),        # b: resident
        ],
        out_specs=pl.BlockSpec((tb, p * out_f), lambda i: (i, 0)),
        compiler_params=pltpu.CompilerParams(
            dimension_semantics=("parallel",),          # megacore shard on v7x
            vmem_limit_bytes=32 * 1024 * 1024,          # ~10 MiB used; headroom on all gens
        ),
    )(xp, wp, bp)

    out = out_p.reshape(bp_rows, out_f)                 # free bitcast back
    return out[:B]


def init_params(key, input_features, output_features, hidden_units=8):
    """Deterministic init matching nn.Linear's U(-1/sqrt(fan_in), 1/sqrt(fan_in))."""
    def linear_init(k, fan_in, fan_out):
        kw, kb = jax.random.split(k)
        bound = 1.0 / jnp.sqrt(fan_in)
        # stored transposed: (fan_in, fan_out) so math is x @ W
        w_t = jax.random.uniform(kw, (fan_in, fan_out), jnp.float32, -bound, bound)
        bias = jax.random.uniform(kb, (1, fan_out), jnp.float32, -bound, bound)
        return w_t, bias

    k1, k2, k3 = jax.random.split(key, 3)
    w1t, b1 = linear_init(k1, input_features, hidden_units)
    w2t, b2 = linear_init(k2, hidden_units, hidden_units)
    w3t, b3 = linear_init(k3, hidden_units, output_features)
    return (w1t, b1, w2t, b2, w3t, b3)


def _reference(x, params):
    w1t, b1, w2t, b2, w3t, b3 = params
    return ((x @ w1t + b1) @ w2t + b2) @ w3t + b3


if __name__ == "__main__":
    key = jax.random.PRNGKey(0)
    k_x, k_x2, k_x3, k_p = jax.random.split(key, 4)

    batch = 8
    input_features = 32
    hidden_units = 8
    output_features = 4

    params = init_params(k_p, input_features, output_features, hidden_units)

    # Small-shape check (B < pack factor: exercises pad-to-P + ragged block).
    x = jax.random.normal(k_x, (batch, input_features), jnp.float32)
    out = jax.block_until_ready(multidef_forward(x, params))
    ref = _reference(x, params)
    assert out.shape == (batch, output_features)
    assert jnp.allclose(out, ref, atol=1e-4, rtol=1e-4)

    # Non-multiple batch: exercises pad-to-P + multi-step grid + ragged tail.
    batch2 = 1037
    x2 = jax.random.normal(k_x2, (batch2, input_features), jnp.float32)
    out2 = jax.block_until_ready(multidef_forward(x2, params))
    ref2 = _reference(x2, params)
    assert out2.shape == (batch2, output_features)
    assert jnp.allclose(out2, ref2, atol=1e-4, rtol=1e-4)

    # Multiple-of-32 batch: no padding at all, lane-dense 2-step grid.
    batch3 = 4096
    x3 = jax.random.normal(k_x3, (batch3, input_features), jnp.float32)
    out3 = jax.block_until_ready(multidef_forward(x3, params))
    ref3 = _reference(x3, params)
    assert out3.shape == (batch3, output_features)
    assert jnp.allclose(out3, ref3, atol=1e-4, rtol=1e-4)

    print("KERNEL_OK")
</pallas_src>

<mosaic_0001>
module attributes {stable_mosaic.version = 11 : i64} {
  func.func @_fused_gemm_bias_kernel(%arg0: i32, %arg1: memref<8x1024xf32, #tpu.memory_space<vmem>>, %arg2: memref<1024x128xf32, #tpu.memory_space<vmem>>, %arg3: memref<1x128xf32, #tpu.memory_space<vmem>>, %arg4: memref<8x128xf32, #tpu.memory_space<vmem>>) attributes {dimension_semantics = [#tpu.dimension_semantics<parallel>], iteration_bounds = array<i64: 1>, scalar_prefetch = 0 : i64, scratch_operands = 0 : i64, tpu.core_type = #tpu.core_type<tc>, window_params = [{transform_indices = @transform_0, window_bounds = array<i64: 8, 1024>}, {pipeline_mode = #tpu.pipeline_mode<synchronous>, transform_indices = @transform_1, window_bounds = array<i64: 1024, 128>}, {pipeline_mode = #tpu.pipeline_mode<synchronous>, transform_indices = @transform_2, window_bounds = array<i64: 1, 128>}, {transform_indices = @transform_3, window_bounds = array<i64: 8, 128>}]} {
    %c0 = arith.constant 0 : index
    %c0_0 = arith.constant 0 : index
    %0 = vector.load %arg1[%c0, %c0_0] : memref<8x1024xf32, #tpu.memory_space<vmem>>, vector<8x1024xf32>
    %c0_1 = arith.constant 0 : index
    %c0_2 = arith.constant 0 : index
    %1 = vector.load %arg2[%c0_1, %c0_2] : memref<1024x128xf32, #tpu.memory_space<vmem>>, vector<1024x128xf32>
    %cst = arith.constant dense<0.000000e+00> : vector<8x128xf32>
    %2 = tpu.matmul %0, %1, %cst {dimension_numbers = #tpu.dot_dimension_numbers<[1], [0], [0], [1], [0, 0, 1, 1], [], []>} : vector<8x1024xf32>, vector<1024x128xf32>, vector<8x128xf32> -> vector<8x128xf32>
    %c0_3 = arith.constant 0 : index
    %c0_4 = arith.constant 0 : index
    %3 = vector.load %arg3[%c0_3, %c0_4] : memref<1x128xf32, #tpu.memory_space<vmem>>, vector<1x128xf32>
    %4 = vector.broadcast %3 : vector<1x128xf32> to vector<8x128xf32>
    %5 = arith.addf %2, %4 : vector<8x128xf32>
    %c0_5 = arith.constant 0 : index
    %c0_6 = arith.constant 0 : index
    %6 = vector.load %arg4[%c0_5, %c0_6] : memref<8x128xf32, #tpu.memory_space<vmem>>, vector<8x128xf32>
    tpu.vector_store %arg4[%c0_5, %c0_6], %5 {strides = array<i32>} : memref<8x128xf32, #tpu.memory_space<vmem>>, vector<8x128xf32>,
    return
  }
  func.func @transform_0(%arg0: i32) -> (i32, i32) {
    %c0_i32 = arith.constant 0 : i32
    %c0_i32_0 = arith.constant 0 : i32
    return %arg0, %c0_i32 : i32, i32
  }
  func.func @transform_1(%arg0: i32) -> (i32, i32) {
    %c0_i32 = arith.constant 0 : i32
    %c0_i32_0 = arith.constant 0 : i32
    %c0_i32_1 = arith.constant 0 : i32
    return %c0_i32, %c0_i32_0 : i32, i32
  }
  func.func @transform_2(%arg0: i32) -> (i32, i32) {
    %c0_i32 = arith.constant 0 : i32
    %c0_i32_0 = arith.constant 0 : i32
    %c0_i32_1 = arith.constant 0 : i32
    return %c0_i32, %c0_i32_0 : i32, i32
  }
  func.func @transform_3(%arg0: i32) -> (i32, i32) {
    %c0_i32 = arith.constant 0 : i32
    %c0_i32_0 = arith.constant 0 : i32
    return %arg0, %c0_i32 : i32, i32
  }
}

</mosaic_0001>

<llo_original>
// kernel: multidef_forward.1
$region0: #{multidef_forward.1}
  #allocation0 [shape = 'u32[]', space=smem, size = 0x4, offset = 0x4, fixed_abs, tag = 'smem constant byte address 0x4 - core index']
  #allocation1 [shape = 'u32[144,128]{1,0:T(1,128)}', space=vmem, size = 0x12000, scoped, tag = 'internal scratch']
  %s0 = inlined_call_operand.vmem [shape: f32[1,1024], index: 0, kind: input, shape index: {}]
  %s1 = inlined_call_operand.vmem [shape: f32[1024,128], index: 1, kind: input, shape index: {}]
  %s2 = inlined_call_operand.vmem [shape: f32[1,128], index: 2, kind: input, shape index: {}]
  %s3 = inlined_call_operand.vmem [shape: f32[1,128], index: 3, kind: output, shape index: {}]
  %s4 = sld [smem:[#allocation0]]
  $region52: #{multidef_forward.1} parent=0
    _
  %s6 = ssub.s32 1, %s4
  %s7 = scalar_select 0, %s6, %s4
  $region1: #{multidef_forward.1} parent=0
    #allocation2 [shape = 'u8[4096]{0}', space=vmem, size = 0x1000, scoped, tag = 'output window, operand 0, single buffered']
    // Predicated region
    $region2: #{multidef_forward.1} parent=1 // pred_check
      _
    $region3: #{multidef_forward.1} parent=1 // pred_check_branch
      %9 = sbr.rel (0) target = $region5
    $region4: #{multidef_forward.1} parent=1 // pred_region
      _
    $region5: #{multidef_forward.1} parent=1 // pred_fallthru
      _
    // Predicated region
    $region6: #{multidef_forward.1} parent=1 // pred_check
      _
    $region7: #{multidef_forward.1} parent=1 // pred_check_branch
      %11 = sbr.rel (0) target = $region9
    $region8: #{multidef_forward.1} parent=1 // pred_region
      _
    $region9: #{multidef_forward.1} parent=1 // pred_fallthru
      _
    // Predicated region
    $region10: #{multidef_forward.1} parent=1 // pred_check
      _
    $region11: #{multidef_forward.1} parent=1 // pred_check_branch
      %13 = sbr.rel (0) target = $region13
    $region12: #{multidef_forward.1} parent=1 // pred_region
      _
    $region13: #{multidef_forward.1} parent=1 // pred_fallthru
      _
    %v14 = vld [vmem:[%s0] sm:$0xff]
    %v15 = vld [vmem:[%s0 + $0x8] sm:$0xff]
    %v16 = vld [vmem:[%s0 + $0x10] sm:$0xff]
    %v17 = vld [vmem:[%s0 + $0x18] sm:$0xff]
    %v18 = vld [vmem:[%s0 + $0x20] sm:$0xff]
    %v19 = vld [vmem:[%s0 + $0x28] sm:$0xff]
    %v20 = vld [vmem:[%s0 + $0x30] sm:$0xff]
    %v21 = vld [vmem:[%s0 + $0x38] sm:$0xff]
    %v22 = vld [vmem:[%s1] sm:$0xff]
    %v23 = vld [vmem:[%s1 + $0x8] sm:$0xff]
    %v24 = vld [vmem:[%s1 + $0x10] sm:$0xff]
    %v25 = vld [vmem:[%s1 + $0x18] sm:$0xff]
    %v26 = vld [vmem:[%s1 + $0x20] sm:$0xff]
    %v27 = vld [vmem:[%s1 + $0x28] sm:$0xff]
    %v28 = vld [vmem:[%s1 + $0x30] sm:$0xff]
    %v29 = vld [vmem:[%s1 + $0x38] sm:$0xff]
    %v30 = vld [vmem:[%s1 + $0x40] sm:$0xff]
    %v31 = vld [vmem:[%s1 + $0x48] sm:$0xff]
    %v32 = vld [vmem:[%s1 + $0x50] sm:$0xff]
    %v33 = vld [vmem:[%s1 + $0x58] sm:$0xff]
    %v34 = vld [vmem:[%s1 + $0x60] sm:$0xff]
    %v35 = vld [vmem:[%s1 + $0x68] sm:$0xff]
    %v36 = vld [vmem:[%s1 + $0x70] sm:$0xff]
    %v37 = vld [vmem:[%s1 + $0x78] sm:$0xff]
    %v38 = vld [vmem:[%s1 + $0x80] sm:$0xff]
    %v39 = vld [vmem:[%s1 + $0x88] sm:$0xff]
    %v40 = vld [vmem:[%s1 + $0x90] sm:$0xff]
    %v41 = vld [vmem:[%s1 + $0x98] sm:$0xff]
    %v42 = vld [vmem:[%s1 + $0xa0] sm:$0xff]
    %v43 = vld [vmem:[%s1 + $0xa8] sm:$0xff]
    %v44 = vld [vmem:[%s1 + $0xb0] sm:$0xff]
    %v45 = vld [vmem:[%s1 + $0xb8] sm:$0xff]
    %v46 = vld [vmem:[%s1 + $0xc0] sm:$0xff]
    %v47 = vld [vmem:[%s1 + $0xc8] sm:$0xff]
    %v48 = vld [vmem:[%s1 + $0xd0] sm:$0xff]
    %v49 = vld [vmem:[%s1 + $0xd8] sm:$0xff]
    %v50 = vld [vmem:[%s1 + $0xe0] sm:$0xff]
    %v51 = vld [vmem:[%s1 + $0xe8] sm:$0xff]
    %v52 = vld [vmem:[%s1 + $0xf0] sm:$0xff]
    %v53 = vld [vmem:[%s1 + $0xf8] sm:$0xff]
    %v54 = vld [vmem:[%s1 + $0x100] sm:$0xff]
    %v55 = vld [vmem:[%s1 + $0x108] sm:$0xff]
    %v56 = vld [vmem:[%s1 + $0x110] sm:$0xff]
    %v57 = vld [vmem:[%s1 + $0x118] sm:$0xff]
    %v58 = vld [vmem:[%s1 + $0x120] sm:$0xff]
    %v59 = vld [vmem:[%s1 + $0x128] sm:$0xff]
    %v60 = vld [vmem:[%s1 + $0x130] sm:$0xff]
    %v61 = vld [vmem:[%s1 + $0x138] sm:$0xff]
    %v62 = vld [vmem:[%s1 + $0x140] sm:$0xff]
    %v63 = vld [vmem:[%s1 + $0x148] sm:$0xff]
    %v64 = vld [vmem:[%s1 + $0x150] sm:$0xff]
    %v65 = vld [vmem:[%s1 + $0x158] sm:$0xff]
    %v66 = vld [vmem:[%s1 + $0x160] sm:$0xff]
    %v67 = vld [vmem:[%s1 + $0x168] sm:$0xff]
    %v68 = vld [vmem:[%s1 + $0x170] sm:$0xff]
    %v69 = vld [vmem:[%s1 + $0x178] sm:$0xff]
    %v70 = vld [vmem:[%s1 + $0x180] sm:$0xff]
    %v71 = vld [vmem:[%s1 + $0x188] sm:$0xff]
    %v72 = vld [vmem:[%s1 + $0x190] sm:$0xff]
    %v73 = vld [vmem:[%s1 + $0x198] sm:$0xff]
    %v74 = vld [vmem:[%s1 + $0x1a0] sm:$0xff]
    %v75 = vld [vmem:[%s1 + $0x1a8] sm:$0xff]
    %v76 = vld [vmem:[%s1 + $0x1b0] sm:$0xff]
    %v77 = vld [vmem:[%s1 + $0x1b8] sm:$0xff]
    %v78 = vld [vmem:[%s1 + $0x1c0] sm:$0xff]
    %v79 = vld [vmem:[%s1 + $0x1c8] sm:$0xff]
    %v80 = vld [vmem:[%s1 + $0x1d0] sm:$0xff]
    %v81 = vld [vmem:[%s1 + $0x1d8] sm:$0xff]
    %v82 = vld [vmem:[%s1 + $0x1e0] sm:$0xff]
    %v83 = vld [vmem:[%s1 + $0x1e8] sm:$0xff]
    %v84 = vld [vmem:[%s1 + $0x1f0] sm:$0xff]
    %v85 = vld [vmem:[%s1 + $0x1f8] sm:$0xff]
    %v86 = vld [vmem:[%s1 + $0x200] sm:$0xff]
    %v87 = vld [vmem:[%s1 + $0x208] sm:$0xff]
    %v88 = vld [vmem:[%s1 + $0x210] sm:$0xff]
    %v89 = vld [vmem:[%s1 + $0x218] sm:$0xff]
    %v90 = vld [vmem:[%s1 + $0x220] sm:$0xff]
    %v91 = vld [vmem:[%s1 + $0x228] sm:$0xff]
    %v92 = vld [vmem:[%s1 + $0x230] sm:$0xff]
    %v93 = vld [vmem:[%s1 + $0x238] sm:$0xff]
    %v94 = vld [vmem:[%s1 + $0x240] sm:$0xff]
    %v95 = vld [vmem:[%s1 + $0x248] sm:$0xff]
    %v96 = vld [vmem:[%s1 + $0x250] sm:$0xff]
    %v97 = vld [vmem:[%s1 + $0x258] sm:$0xff]
    %v98 = vld [vmem:[%s1 + $0x260] sm:$0xff]
    %v99 = vld [vmem:[%s1 + $0x268] sm:$0xff]
    %v100 = vld [vmem:[%s1 + $0x270] sm:$0xff]
    %v101 = vld [vmem:[%s1 + $0x278] sm:$0xff]
    %v102 = vld [vmem:[%s1 + $0x280] sm:$0xff]
    %v103 = vld [vmem:[%s1 + $0x288] sm:$0xff]
    %v104 = vld [vmem:[%s1 + $0x290] sm:$0xff]
    %v105 = vld [vmem:[%s1 + $0x298] sm:$0xff]
    %v106 = vld [vmem:[%s1 + $0x2a0] sm:$0xff]
    %v107 = vld [vmem:[%s1 + $0x2a8] sm:$0xff]
    %v108 = vld [vmem:[%s1 + $0x2b0] sm:$0xff]
    %v109 = vld [vmem:[%s1 + $0x2b8] sm:$0xff]
    %v110 = vld [vmem:[%s1 + $0x2c0] sm:$0xff]
    %v111 = vld [vmem:[%s1 + $0x2c8] sm:$0xff]
    %v112 = vld [vmem:[%s1 + $0x2d0] sm:$0xff]
    %v113 = vld [vmem:[%s1 + $0x2d8] sm:$0xff]
    %v114 = vld [vmem:[%s1 + $0x2e0] sm:$0xff]
    %v115 = vld [vmem:[%s1 + $0x2e8] sm:$0xff]
    %v116 = vld [vmem:[%s1 + $0x2f0] sm:$0xff]
    %v117 = vld [vmem:[%s1 + $0x2f8] sm:$0xff]
    %v118 = vld [vmem:[%s1 + $0x300] sm:$0xff]
    %v119 = vld [vmem:[%s1 + $0x308] sm:$0xff]
    %v120 = vld [vmem:[%s1 + $0x310] sm:$0xff]
    %v121 = vld [vmem:[%s1 + $0x318] sm:$0xff]
    %v122 = vld [vmem:[%s1 + $0x320] sm:$0xff]
    %v123 = vld [vmem:[%s1 + $0x328] sm:$0xff]
    %v124 = vld [vmem:[%s1 + $0x330] sm:$0xff]
    %v125 = vld [vmem:[%s1 + $0x338] sm:$0xff]
    %v126 = vld [vmem:[%s1 + $0x340] sm:$0xff]
    %v127 = vld [vmem:[%s1 + $0x348] sm:$0xff]
    %v128 = vld [vmem:[%s1 + $0x350] sm:$0xff]
    %v129 = vld [vmem:[%s1 + $0x358] sm:$0xff]
    %v130 = vld [vmem:[%s1 + $0x360] sm:$0xff]
    %v131 = vld [vmem:[%s1 + $0x368] sm:$0xff]
    %v132 = vld [vmem:[%s1 + $0x370] sm:$0xff]
    %v133 = vld [vmem:[%s1 + $0x378] sm:$0xff]
    %v134 = vld [vmem:[%s1 + $0x380] sm:$0xff]
    %v135 = vld [vmem:[%s1 + $0x388] sm:$0xff]
    %v136 = vld [vmem:[%s1 + $0x390] sm:$0xff]
    %v137 = vld [vmem:[%s1 + $0x398] sm:$0xff]
    %v138 = vld [vmem:[%s1 + $0x3a0] sm:$0xff]
    %v139 = vld [vmem:[%s1 + $0x3a8] sm:$0xff]
    %v140 = vld [vmem:[%s1 + $0x3b0] sm:$0xff]
    %v141 = vld [vmem:[%s1 + $0x3b8] sm:$0xff]
    %v142 = vld [vmem:[%s1 + $0x3c0] sm:$0xff]
    %v143 = vld [vmem:[%s1 + $0x3c8] sm:$0xff]
    %v144 = vld [vmem:[%s1 + $0x3d0] sm:$0xff]
    %v145 = vld [vmem:[%s1 + $0x3d8] sm:$0xff]
    %v146 = vld [vmem:[%s1 + $0x3e0] sm:$0xff]
    %v147 = vld [vmem:[%s1 + $0x3e8] sm:$0xff]
    %v148 = vld [vmem:[%s1 + $0x3f0] sm:$0xff]
    %v149 = vld [vmem:[%s1 + $0x3f8] sm:$0xff]
    %v150 = vld [vmem:[%s2] sm:$0x1]
    %v152 = vlaneseq
    %v153 = vshrl.u32 %v152, 7
    %v154 = vsub.s32 0, %v153
    %v155 = vrot.slane %v150, %v154
    %v165 = vcombine.low %v14, %v15
    %v166 = vcombine.high %v14, %v15
    %v167 = vcombine.low %v16, %v17
    %v168 = vcombine.high %v16, %v17
    %v169 = vcombine.low %v18, %v19
    %v170 = vcombine.high %v18, %v19
    %v171 = vcombine.low %v20, %v21
    %v172 = vcombine.high %v20, %v21
    %v174 = vunpack.c.l.s4 1966171168
    %v175 = vunpack.c.0.s8 %v174
    %v176 = vlaneseq
    %v177 = vshrl.u32 %v176, 7
    %v178 = vsub.s32 %v175, %v177
    %v179 = vrot.slane %v165, %v178
    %v181 = vunpack.c.l.s4 1966171168
    %v182 = vunpack.c.0.s8 %v181
    %v183 = vlaneseq
    %v184 = vshrl.u32 %v183, 7
    %v185 = vsub.s32 %v182, %v184
    %v186 = vrot.slane %v166, %v185
    %v188 = vunpack.c.l.s4 1966171168
    %v189 = vunpack.c.0.s8 %v188
    %v190 = vlaneseq
    %v191 = vshrl.u32 %v190, 7
    %v192 = vsub.s32 %v189, %v191
    %v193 = vrot.slane %v167, %v192
    %v195 = vunpack.c.l.s4 1966171168
    %v196 = vunpack.c.0.s8 %v195
    %v197 = vlaneseq
    %v198 = vshrl.u32 %v197, 7
    %v199 = vsub.s32 %v196, %v198
    %v200 = vrot.slane %v168, %v199
    %v202 = vunpack.c.l.s4 1966171168
    %v203 = vunpack.c.0.s8 %v202
    %v204 = vlaneseq
    %v205 = vshrl.u32 %v204, 7
    %v206 = vsub.s32 %v203, %v205
    %v207 = vrot.slane %v169, %v206
    %v209 = vunpack.c.l.s4 1966171168
    %v210 = vunpack.c.0.s8 %v209
    %v211 = vlaneseq
    %v212 = vshrl.u32 %v211, 7
    %v213 = vsub.s32 %v210, %v212
    %v214 = vrot.slane %v170, %v213
    %v216 = vunpack.c.l.s4 1966171168
    %v217 = vunpack.c.0.s8 %v216
    %v218 = vlaneseq
    %v219 = vshrl.u32 %v218, 7
    %v220 = vsub.s32 %v217, %v219
    %v221 = vrot.slane %v171, %v220
    %v223 = vunpack.c.l.s4 1966171168
    %v224 = vunpack.c.0.s8 %v223
    %v225 = vlaneseq
    %v226 = vshrl.u32 %v225, 7
    %v227 = vsub.s32 %v224, %v226
    %v228 = vrot.slane %v172, %v227
    %v229 = vcombine.low %v179, %v193
    %v230 = vcombine.high %v179, %v193
    %v231 = vcombine.low %v186, %v200
    %v232 = vcombine.high %v186, %v200
    %v233 = vcombine.low %v207, %v221
    %v234 = vcombine.high %v207, %v221
    %v235 = vcombine.low %v214, %v228
    %v236 = vcombine.high %v214, %v228
    %v238 = vunpack.c.l.s4 1966171168
    %v239 = vunpack.c.0.s8 %v238
    %v240 = vlaneseq
    %v241 = vshrl.u32 %v240, 7
    %v242 = vsub.s32 %v239, %v241
    %v243 = vrot.slane %v229, %v242
    %v245 = vunpack.c.l.s4 1966171168
    %v246 = vunpack.c.0.s8 %v245
    %v247 = vlaneseq
    %v248 = vshrl.u32 %v247, 7
    %v249 = vsub.s32 %v246, %v248
    %v250 = vrot.slane %v231, %v249
    %v252 = vunpack.c.l.s4 1966171168
    %v253 = vunpack.c.0.s8 %v252
    %v254 = vlaneseq
    %v255 = vshrl.u32 %v254, 7
    %v256 = vsub.s32 %v253, %v255
    %v257 = vrot.slane %v230, %v256
    %v259 = vunpack.c.l.s4 1966171168
    %v260 = vunpack.c.0.s8 %v259
    %v261 = vlaneseq
    %v262 = vshrl.u32 %v261, 7
    %v263 = vsub.s32 %v260, %v262
    %v264 = vrot.slane %v232, %v263
    %v266 = vunpack.c.l.s4 1966171168
    %v267 = vunpack.c.0.s8 %v266
    %v268 = vlaneseq
    %v269 = vshrl.u32 %v268, 7
    %v270 = vsub.s32 %v267, %v269
    %v271 = vrot.slane %v233, %v270
    %v273 = vunpack.c.l.s4 1966171168
    %v274 = vunpack.c.0.s8 %v273
    %v275 = vlaneseq
    %v276 = vshrl.u32 %v275, 7
    %v277 = vsub.s32 %v274, %v276
    %v278 = vrot.slane %v235, %v277
    %v280 = vunpack.c.l.s4 1966171168
    %v281 = vunpack.c.0.s8 %v280
    %v282 = vlaneseq
    %v283 = vshrl.u32 %v282, 7
    %v284 = vsub.s32 %v281, %v283
    %v285 = vrot.slane %v234, %v284
    %v287 = vunpack.c.l.s4 1966171168
    %v288 = vunpack.c.0.s8 %v287
    %v289 = vlaneseq
    %v290 = vshrl.u32 %v289, 7
    %v291 = vsub.s32 %v288, %v290
    %v292 = vrot.slane %v236, %v291
    %v293 = vcombine.low %v243, %v271
    %v294 = vcombine.high %v243, %v271
    %v295 = vcombine.low %v250, %v278
    %v296 = vcombine.high %v250, %v278
    %v297 = vcombine.low %v257, %v285
    %v298 = vcombine.high %v257, %v285
    %v299 = vcombine.low %v264, %v292
    %v300 = vcombine.high %v264, %v292
    %309 = vmatprep.subr.mxu0 0.0
    %310 = vmatpush1.msra.mxu0 %v22
    %311 = vmatprep.subr.mxu0 0.0
    %312 = vmatpush1.msra.mxu0 %v23
    %313 = vmatprep.subr.mxu0 0.0
    %314 = vmatpush1.msra.mxu0 %v24
    %315 = vmatprep.subr.mxu0 0.0
    %316 = vmatpush1.msra.mxu0 %v25
    %317 = vmatprep.subr.mxu0 0.0
    %318 = vmatpush1.msra.mxu0 %v26
    %319 = vmatprep.subr.mxu0 0.0
    %320 = vmatpush1.msra.mxu0 %v27
    %321 = vmatprep.subr.mxu0 0.0
    %322 = vmatpush1.msra.mxu0 %v28
    %323 = vmatprep.subr.mxu0 0.0
    %324 = vmatpush1.msra.mxu0 %v29
    %325 = vmatprep.subr.mxu0 0.0
    %326 = vmatpush1.msra.mxu0 %v30
    %327 = vmatprep.subr.mxu0 0.0
    %328 = vmatpush1.msra.mxu0 %v31
    %329 = vmatprep.subr.mxu0 0.0
    %330 = vmatpush1.msra.mxu0 %v32
    %331 = vmatprep.subr.mxu0 0.0
    %332 = vmatpush1.msra.mxu0 %v33
    %333 = vmatprep.subr.mxu0 0.0
    %334 = vmatpush1.msra.mxu0 %v34
    %335 = vmatprep.subr.mxu0 0.0
    %336 = vmatpush1.msra.mxu0 %v35
    %337 = vmatprep.subr.mxu0 0.0
    %338 = vmatpush1.msra.mxu0 %v36
    %339 = vmatprep.subr.mxu0 0.0
    %340 = vmatpush1.msra.mxu0 %v37
    %341 = vmatprep.subr.mxu0 0.0
    %342 = vmatpush1.msra.mxu0 %v38
    %343 = vmatprep.subr.mxu0 0.0
    %344 = vmatpush1.msra.mxu0 %v39
    %345 = vmatprep.subr.mxu0 0.0
    %346 = vmatpush1.msra.mxu0 %v40
    %347 = vmatprep.subr.mxu0 0.0
    %348 = vmatpush1.msra.mxu0 %v41
    %349 = vmatprep.subr.mxu0 0.0
    %350 = vmatpush1.msra.mxu0 %v42
    %351 = vmatprep.subr.mxu0 0.0
    %352 = vmatpush1.msra.mxu0 %v43
    %353 = vmatprep.subr.mxu0 0.0
    %354 = vmatpush1.msra.mxu0 %v44
    %355 = vmatprep.subr.mxu0 0.0
    %356 = vmatpush1.msra.mxu0 %v45
    %357 = vmatprep.subr.mxu0 0.0
    %358 = vmatpush1.msra.mxu0 %v46
    %359 = vmatprep.subr.mxu0 0.0
    %360 = vmatpush1.msra.mxu0 %v47
    %361 = vmatprep.subr.mxu0 0.0
    %362 = vmatpush1.msra.mxu0 %v48
    %363 = vmatprep.subr.mxu0 0.0
    %364 = vmatpush1.msra.mxu0 %v49
    %365 = vmatprep.subr.mxu0 0.0
    %366 = vmatpush1.msra.mxu0 %v50
    %367 = vmatprep.subr.mxu0 0.0
    %368 = vmatpush1.msra.mxu0 %v51
    %369 = vmatprep.subr.mxu0 0.0
    %370 = vmatpush1.msra.mxu0 %v52
    %371 = vmatprep.subr.mxu0 0.0
    %372 = vmatpush1.msra.mxu0 %v53
    %373 = vmatprep.mubr.f32.mxu0 %v297
    %374 = vmatmul.mubr.f32.gmra.mrb[0].mxu0 %v293
    %v375 = vpop.f32.mrb[0].mxu0
    %v376 = vadd.f32 %v155, %v375
    %v377 = vpop.f32.mrb[0].mxu0
    %378 = vdwg.mxu0
    %379 = vmatprep.subr.mxu0 0.0
    %380 = vmatpush1.msra.mxu0 %v54
    %381 = vmatprep.subr.mxu0 0.0
    %382 = vmatpush1.msra.mxu0 %v55
    %383 = vmatprep.subr.mxu0 0.0
    %384 = vmatpush1.msra.mxu0 %v56
    %385 = vmatprep.subr.mxu0 0.0
    %386 = vmatpush1.msra.mxu0 %v57
    %387 = vmatprep.subr.mxu0 0.0
    %388 = vmatpush1.msra.mxu0 %v58
    %389 = vmatprep.subr.mxu0 0.0
    %390 = vmatpush1.msra.mxu0 %v59
    %391 = vmatprep.subr.mxu0 0.0
    %392 = vmatpush1.msra.mxu0 %v60
    %393 = vmatprep.subr.mxu0 0.0
    %394 = vmatpush1.msra.mxu0 %v61
    %395 = vmatprep.subr.mxu0 0.0
    %396 = vmatpush1.msra.mxu0 %v62
    %397 = vmatprep.subr.mxu0 0.0
    %398 = vmatpush1.msra.mxu0 %v63
    %399 = vmatprep.subr.mxu0 0.0
    %400 = vmatpush1.msra.mxu0 %v64
    %401 = vmatprep.subr.mxu0 0.0
    %402 = vmatpush1.msra.mxu0 %v65
    %403 = vmatprep.subr.mxu0 0.0
    %404 = vmatpush1.msra.mxu0 %v66
    %405 = vmatprep.subr.mxu0 0.0
    %406 = vmatpush1.msra.mxu0 %v67
    %407 = vmatprep.subr.mxu0 0.0
    %408 = vmatpush1.msra.mxu0 %v68
    %409 = vmatprep.subr.mxu0 0.0
    %410 = vmatpush1.msra.mxu0 %v69
    %411 = vmatprep.subr.mxu0 0.0
    %412 = vmatpush1.msra.mxu0 %v70
    %413 = vmatprep.subr.mxu0 0.0
    %414 = vmatpush1.msra.mxu0 %v71
    %415 = vmatprep.subr.mxu0 0.0
    %416 = vmatpush1.msra.mxu0 %v72
    %417 = vmatprep.subr.mxu0 0.0
    %418 = vmatpush1.msra.mxu0 %v73
    %419 = vmatprep.subr.mxu0 0.0
    %420 = vmatpush1.msra.mxu0 %v74
    %421 = vmatprep.subr.mxu0 0.0
    %422 = vmatpush1.msra.mxu0 %v75
    %423 = vmatprep.subr.mxu0 0.0
    %424 = vmatpush1.msra.mxu0 %v76
    %425 = vmatprep.subr.mxu0 0.0
    %426 = vmatpush1.msra.mxu0 %v77
    %427 = vmatprep.subr.mxu0 0.0
    %428 = vmatpush1.msra.mxu0 %v78
    %429 = vmatprep.subr.mxu0 0.0
    %430 = vmatpush1.msra.mxu0 %v79
    %431 = vmatprep.subr.mxu0 0.0
    %432 = vmatpush1.msra.mxu0 %v80
    %433 = vmatprep.subr.mxu0 0.0
    %434 = vmatpush1.msra.mxu0 %v81
    %435 = vmatprep.subr.mxu0 0.0
    %436 = vmatpush1.msra.mxu0 %v82
    %437 = vmatprep.subr.mxu0 0.0
    %438 = vmatpush1.msra.mxu0 %v83
    %439 = vmatprep.subr.mxu0 0.0
    %440 = vmatpush1.msra.mxu0 %v84
    %441 = vmatprep.subr.mxu0 0.0
    %442 = vmatpush1.msra.mxu0 %v85
    %443 = vmatprep.mubr.f32.mxu0 %v298
    %444 = vmatmul.mubr.f32.gmra.mrb[0].mxu0 %v294
    %v445 = vpop.f32.mrb[0].mxu0
    %v446 = vadd.f32 %v376, %v445
    %v447 = vpop.f32.mrb[0].mxu0
    %448 = vdwg.mxu0
    %449 = vmatprep.subr.mxu0 0.0
    %450 = vmatpush1.msra.mxu0 %v86
    %451 = vmatprep.subr.mxu0 0.0
    %452 = vmatpush1.msra.mxu0 %v87
    %453 = vmatprep.subr.mxu0 0.0
    %454 = vmatpush1.msra.mxu0 %v88
    %455 = vmatprep.subr.mxu0 0.0
    %456 = vmatpush1.msra.mxu0 %v89
    %457 = vmatprep.subr.mxu0 0.0
    %458 = vmatpush1.msra.mxu0 %v90
    %459 = vmatprep.subr.mxu0 0.0
    %460 = vmatpush1.msra.mxu0 %v91
    %461 = vmatprep.subr.mxu0 0.0
    %462 = vmatpush1.msra.mxu0 %v92
    %463 = vmatprep.subr.mxu0 0.0
    %464 = vmatpush1.msra.mxu0 %v93
    %465 = vmatprep.subr.mxu0 0.0
    %466 = vmatpush1.msra.mxu0 %v94
    %467 = vmatprep.subr.mxu0 0.0
    %468 = vmatpush1.msra.mxu0 %v95
    %469 = vmatprep.subr.mxu0 0.0
    %470 = vmatpush1.msra.mxu0 %v96
    %471 = vmatprep.subr.mxu0 0.0
    %472 = vmatpush1.msra.mxu0 %v97
    %473 = vmatprep.subr.mxu0 0.0
    %474 = vmatpush1.msra.mxu0 %v98
    %475 = vmatprep.subr.mxu0 0.0
    %476 = vmatpush1.msra.mxu0 %v99
    %477 = vmatprep.subr.mxu0 0.0
    %478 = vmatpush1.msra.mxu0 %v100
    %479 = vmatprep.subr.mxu0 0.0
    %480 = vmatpush1.msra.mxu0 %v101
    %481 = vmatprep.subr.mxu0 0.0
    %482 = vmatpush1.msra.mxu0 %v102
    %483 = vmatprep.subr.mxu0 0.0
    %484 = vmatpush1.msra.mxu0 %v103
    %485 = vmatprep.subr.mxu0 0.0
    %486 = vmatpush1.msra.mxu0 %v104
    %487 = vmatprep.subr.mxu0 0.0
    %488 = vmatpush1.msra.mxu0 %v105
    %489 = vmatprep.subr.mxu0 0.0
    %490 = vmatpush1.msra.mxu0 %v106
    %491 = vmatprep.subr.mxu0 0.0
    %492 = vmatpush1.msra.mxu0 %v107
    %493 = vmatprep.subr.mxu0 0.0
    %494 = vmatpush1.msra.mxu0 %v108
    %495 = vmatprep.subr.mxu0 0.0
    %496 = vmatpush1.msra.mxu0 %v109
    %497 = vmatprep.subr.mxu0 0.0
    %498 = vmatpush1.msra.mxu0 %v110
    %499 = vmatprep.subr.mxu0 0.0
    %500 = vmatpush1.msra.mxu0 %v111
    %501 = vmatprep.subr.mxu0 0.0
    %502 = vmatpush1.msra.mxu0 %v112
    %503 = vmatprep.subr.mxu0 0.0
    %504 = vmatpush1.msra.mxu0 %v113
    %505 = vmatprep.subr.mxu0 0.0
    %506 = vmatpush1.msra.mxu0 %v114
    %507 = vmatprep.subr.mxu0 0.0
    %508 = vmatpush1.msra.mxu0 %v115
    %509 = vmatprep.subr.mxu0 0.0
    %510 = vmatpush1.msra.mxu0 %v116
    %511 = vmatprep.subr.mxu0 0.0
    %512 = vmatpush1.msra.mxu0 %v117
    %513 = vmatprep.mubr.f32.mxu0 %v299
    %514 = vmatmul.mubr.f32.gmra.mrb[0].mxu0 %v295
    %v515 = vpop.f32.mrb[0].mxu0
    %v516 = vadd.f32 %v446, %v515
    %v517 = vpop.f32.mrb[0].mxu0
    %518 = vdwg.mxu0
    %519 = vmatprep.subr.mxu0 0.0
    %520 = vmatpush1.msra.mxu0 %v118
    %521 = vmatprep.subr.mxu0 0.0
    %522 = vmatpush1.msra.mxu0 %v119
    %523 = vmatprep.subr.mxu0 0.0
    %524 = vmatpush1.msra.mxu0 %v120
    %525 = vmatprep.subr.mxu0 0.0
    %526 = vmatpush1.msra.mxu0 %v121
    %527 = vmatprep.subr.mxu0 0.0
    %528 = vmatpush1.msra.mxu0 %v122
    %529 = vmatprep.subr.mxu0 0.0
    %530 = vmatpush1.msra.mxu0 %v123
    %531 = vmatprep.subr.mxu0 0.0
    %532 = vmatpush1.msra.mxu0 %v124
    %533 = vmatprep.subr.mxu0 0.0
    %534 = vmatpush1.msra.mxu0 %v125
    %535 = vmatprep.subr.mxu0 0.0
    %536 = vmatpush1.msra.mxu0 %v126
    %537 = vmatprep.subr.mxu0 0.0
    %538 = vmatpush1.msra.mxu0 %v127
    %539 = vmatprep.subr.mxu0 0.0
    %540 = vmatpush1.msra.mxu0 %v128
    %541 = vmatprep.subr.mxu0 0.0
    %542 = vmatpush1.msra.mxu0 %v129
    %543 = vmatprep.subr.mxu0 0.0
    %544 = vmatpush1.msra.mxu0 %v130
    %545 = vmatprep.subr.mxu0 0.0
    %546 = vmatpush1.msra.mxu0 %v131
    %547 = vmatprep.subr.mxu0 0.0
    %548 = vmatpush1.msra.mxu0 %v132
    %549 = vmatprep.subr.mxu0 0.0
    %550 = vmatpush1.msra.mxu0 %v133
    %551 = vmatprep.subr.mxu0 0.0
    %552 = vmatpush1.msra.mxu0 %v134
    %553 = vmatprep.subr.mxu0 0.0
    %554 = vmatpush1.msra.mxu0 %v135
    %555 = vmatprep.subr.mxu0 0.0
    %556 = vmatpush1.msra.mxu0 %v136
    %557 = vmatprep.subr.mxu0 0.0
    %558 = vmatpush1.msra.mxu0 %v137
    %559 = vmatprep.subr.mxu0 0.0
    %560 = vmatpush1.msra.mxu0 %v138
    %561 = vmatprep.subr.mxu0 0.0
    %562 = vmatpush1.msra.mxu0 %v139
    %563 = vmatprep.subr.mxu0 0.0
    %564 = vmatpush1.msra.mxu0 %v140
    %565 = vmatprep.subr.mxu0 0.0
    %566 = vmatpush1.msra.mxu0 %v141
    %567 = vmatprep.subr.mxu0 0.0
    %568 = vmatpush1.msra.mxu0 %v142
    %569 = vmatprep.subr.mxu0 0.0
    %570 = vmatpush1.msra.mxu0 %v143
    %571 = vmatprep.subr.mxu0 0.0
    %572 = vmatpush1.msra.mxu0 %v144
    %573 = vmatprep.subr.mxu0 0.0
    %574 = vmatpush1.msra.mxu0 %v145
    %575 = vmatprep.subr.mxu0 0.0
    %576 = vmatpush1.msra.mxu0 %v146
    %577 = vmatprep.subr.mxu0 0.0
    %578 = vmatpush1.msra.mxu0 %v147
    %579 = vmatprep.subr.mxu0 0.0
    %580 = vmatpush1.msra.mxu0 %v148
    %581 = vmatprep.subr.mxu0 0.0
    %582 = vmatpush1.msra.mxu0 %v149
    %583 = vmatprep.mubr.f32.mxu0 %v300
    %584 = vmatmul.mubr.f32.gmra.mrb[0].mxu0 %v296
    %v585 = vpop.f32.mrb[0].mxu0
    %v586 = vadd.f32 %v516, %v585
    %v587 = vpop.f32.mrb[0].mxu0
    %588 = vdwg.mxu0
    %589 = vst [vmem:[#allocation2] sm:$0xff] %v586
    // Predicated region
    $region14: #{multidef_forward.1} parent=1 // pred_check
      _
    $region15: #{multidef_forward.1} parent=1 // pred_check_branch
      %591 = sbr.rel (0) target = $region17
    $region16: #{multidef_forward.1} parent=1 // pred_region
      // Predicated region
      $region18: #{multidef_forward.1} parent=16 // pred_check
        _
      $region19: #{multidef_forward.1} parent=16 // pred_check_branch
        %593 = sbr.rel (0) target = $region21
      $region20: #{multidef_forward.1} parent=16 // pred_region
        // Predicated region
        $region22: #{multidef_forward.1} parent=20 // pred_check
          _
        $region23: #{multidef_forward.1} parent=20 // pred_check_branch
          %595 = sbr.rel target = $region25
        $region24: #{multidef_forward.1} parent=20 // pred_region
          // Predicated region
          $region37: #{multidef_forward.1} parent=24 // pred_check
            _
          $region38: #{multidef_forward.1} parent=24 // pred_check_branch
            %610 = sbr.rel (0) target = $region40
          $region39: #{multidef_forward.1} parent=24 // pred_region
            loop: start=0, step=1, limit=1
            $region41: #{multidef_forward.1} parent=39 // loop_pre_header
              _
            $region42: #{multidef_forward.1} parent=39 // loop_header
              %s613 = sphi 0, %s617
              %p614 = scmp.ge.s32.totalorder %s613, 1
              %s618 = sphi [#allocation2], [#allocation2]
              %s619 = sphi %s3, %s3
            $region43: #{multidef_forward.1} parent=39 // loop_header_branch
              %616 = sbr.rel (%p614) target = $region47
            $region44: #{multidef_forward.1} parent=39 // loop_body
              %v620 = vld [vmem:[%s618] sm:$0x1]
              %621 = vst [vmem:[%s619] sm:$0x1] %v620
            $region45: #{multidef_forward.1} parent=39 // loop_footer
              %s617 = sadd.s32 1, %s613
            $region46: #{multidef_forward.1} parent=39 // loop_footer_branch
              %612 = sbr.rel target = $region42
            $region47: #{multidef_forward.1} parent=39 // loop_exit
              _
          $region40: #{multidef_forward.1} parent=24 // pred_fallthru
            _
        $region25: #{multidef_forward.1} parent=20 // pred_fallthru
          _
        // Predicated region
        $region26: #{multidef_forward.1} parent=20 // pred_check
          _
        $region27: #{multidef_forward.1} parent=20 // pred_check_branch
          %597 = sbr.rel (0) target = $region29
        $region28: #{multidef_forward.1} parent=20 // pred_region
          loop: start=0, step=1, limit=1
          $region30: #{multidef_forward.1} parent=28 // loop_pre_header
            _
          $region31: #{multidef_forward.1} parent=28 // loop_header
            %s600 = sphi 0, %s604
            %p601 = scmp.ge.s32.totalorder %s600, 1
            %s605 = sphi [#allocation2], [#allocation2]
            %s606 = sphi %s3, %s3
          $region32: #{multidef_forward.1} parent=28 // loop_header_branch
            %603 = sbr.rel (%p601) target = $region36
          $region33: #{multidef_forward.1} parent=28 // loop_body
            %v607 = vld [vmem:[%s605] sm:$0x1]
            %608 = vst [vmem:[%s606] sm:$0x1] %v607
          $region34: #{multidef_forward.1} parent=28 // loop_footer
            %s604 = sadd.s32 1, %s600
          $region35: #{multidef_forward.1} parent=28 // loop_footer_branch
            %599 = sbr.rel target = $region31
          $region36: #{multidef_forward.1} parent=28 // loop_exit
            _
        $region29: #{multidef_forward.1} parent=20 // pred_fallthru
          _
      $region21: #{multidef_forward.1} parent=16 // pred_fallthru
        _
      %622 = vnop
    $region17: #{multidef_forward.1} parent=1 // pred_fallthru
      _
    // Predicated region
    $region48: #{multidef_forward.1} parent=1 // pred_check
      _
    $region49: #{multidef_forward.1} parent=1 // pred_check_branch
      %624 = sbr.rel (0) target = $region51
    $region50: #{multidef_forward.1} parent=1 // pred_region
      _
    $region51: #{multidef_forward.1} parent=1 // pred_fallthru
      _

</llo_original>
